<compile_context>
chip_gen: v7x
topology: tpu7x:2x2x1
jax: 0.10.0
libtpu: 0.0.40
codegen_flags: <defaults>
</compile_context>

<pallas_src>
import jax
import jax.numpy as jnp
from jax.experimental import pallas as pl
from jax.experimental.pallas import tpu as pltpu

_LANE = 128


def _make_kernel(out_num: int, seg: int):
    """seg = padded lane width of each fused-weight segment (multiple of 128).
    Fused weight layout along lanes: [W_v | W_q*coef | W_k], each `seg` wide."""

    def kernel(x_ref, w_ref, o_ref):
        bblk, t, d = x_ref.shape

        # Fused lane-dense projection: one MXU stream, bf16 operands,
        # f32 accumulation.  The (bblk,T,D)->(bblk*T,D) merge is a free
        # relayout because bblk == 1 or T % 8 == 0 (enforced in wrapper).
        x2d = x_ref[...].reshape(bblk * t, d).astype(jnp.bfloat16)
        qkv = jnp.dot(x2d, w_ref[...], preferred_element_type=jnp.float32)

        # 128-lane tile-aligned slices; zero-padded lanes are inert (they
        # contribute 0 to QK^T and unused output columns).
        v = qkv[:, 0 * seg:1 * seg].reshape(bblk, t, seg)
        q = qkv[:, 1 * seg:2 * seg].reshape(bblk, t, seg)
        k = qkv[:, 2 * seg:3 * seg].reshape(bblk, t, seg)

        # Scores: contract feature dims directly (no explicit K transpose).
        # The 1/sqrt(F) coefficient is pre-folded into the W_q segment.
        s = jnp.einsum('bqf,bkf->bqk',
                       q.astype(jnp.bfloat16), k.astype(jnp.bfloat16),
                       preferred_element_type=jnp.float32)

        # Numerically-stable softmax over keys (f32); normalization deferred
        # until after the PV matmul so the T*T tensor is never multiplied.
        # TODO(synk): for non-toy T, tile the key axis (grid dim / fori_loop)
        # with online-softmax accumulators instead of materializing (bblk,T,T).
        s = s - jnp.max(s, axis=-1, keepdims=True)
        p = jnp.exp(s)
        inv = pl.reciprocal(jnp.sum(p, axis=-1, keepdims=True), approx=True)

        out_un = jnp.einsum('bqk,bko->bqo',
                            p.astype(jnp.bfloat16), v.astype(jnp.bfloat16),
                            preferred_element_type=jnp.float32)
        out = out_un * inv

        # Store only the true output columns (masked vst beats a 4x-padded
        # writeback + a separate wrapper slice pass at small O).
        o_ref[...] = out[:, :, :out_num].astype(o_ref.dtype)

    return kernel


def prepare_fused_weight(w_q, w_k, w_v, *, dtype=jnp.bfloat16):
    """Build the fused projection weight ONCE (keep out of the per-call path).

    Lane layout: [W_v | W_q * (1/sqrt(F)) | W_k], each segment zero-padded to a
    full 128-lane tile so in-kernel slices are (8,128)-tile aligned.
    """
    d_in, f = w_q.shape
    o = w_v.shape[1]
    seg = max(pl.cdiv(f, _LANE), pl.cdiv(o, _LANE)) * _LANE
    coef = 1.0 / (float(f) ** 0.5)

    def pad(w):
        return jnp.pad(w, ((0, 0), (0, seg - w.shape[1])))

    w_fused = jnp.concatenate([pad(w_v), pad(w_q * coef), pad(w_k)],
                              axis=1).astype(dtype)
    return w_fused, seg


def _estimate_step_vmem_bytes(bb, t, d_in, seg, out_num):
    rows = bb * t
    x_blk = 2 * rows * d_in * 4           # double-buffered input block (f32 worst case)
    o_blk = 2 * rows * out_num * 4        # double-buffered output block
    qkv_f32 = rows * 3 * seg * 4
    qkv_bf16 = rows * 3 * seg * 2         # bf16 casts of q/k/v
    scores = 2 * bb * t * t * 4           # s and p
    out_un = rows * seg * 4
    return x_blk + o_blk + qkv_f32 + qkv_bf16 + scores + out_un


def _pick_batch_block(b, t, d_in, seg, out_num):
    """Largest divisor of B that (a) leaves >= 2 grid steps so v7x's two
    TensorCores both get work and the input DMA can pipeline, and (b) stays
    within a conservative VMEM budget (safe for v7x 64 MiB / v5e 16 MiB scoped
    defaults once the explicit limit below is applied)."""
    if b <= 1:
        return b
    budget = 24 << 20
    best = 1
    for bb in range(1, b // 2 + 1):
        if b % bb == 0 and _estimate_step_vmem_bytes(bb, t, d_in, seg, out_num) <= budget:
            best = bb
    return best


def self_attention_1d(x, w_fused, *, seg, output_num, batch_block=None):
    """x: [B, T, D_in]; w_fused: [D_in, 3*seg] from prepare_fused_weight -> [B, T, O]."""
    b, t, d_in = x.shape
    w_total = w_fused.shape[1]
    assert w_total == 3 * seg

    if batch_block is None:
        batch_block = _pick_batch_block(b, t, d_in, seg, output_num)
    assert b % batch_block == 0, "batch_block must divide B"
    # Keep the in-kernel (bblk,T,D)->(bblk*T,D) merge a free relayout.
    assert batch_block == 1 or t % 8 == 0, \
        "T must be a multiple of 8 when batch_block > 1 (sublane quantum)"

    est = _estimate_step_vmem_bytes(batch_block, t, d_in, seg, output_num)
    w_bytes = w_fused.size * w_fused.dtype.itemsize
    vmem_limit = int(min(max(2 * est + 2 * w_bytes, 16 << 20), 100 << 20))

    grid_spec = pltpu.PrefetchScalarGridSpec(
        num_scalar_prefetch=0,
        grid=(b // batch_block,),
        in_specs=[
            pl.BlockSpec((batch_block, t, d_in), lambda i: (i, 0, 0)),
            pl.BlockSpec((d_in, w_total), lambda i: (0, 0)),   # resident weights
        ],
        out_specs=pl.BlockSpec((batch_block, t, output_num), lambda i: (i, 0, 0)),
    )

    return pl.pallas_call(
        _make_kernel(output_num, seg),
        out_shape=jax.ShapeDtypeStruct((b, t, output_num), x.dtype),
        grid_spec=grid_spec,
        compiler_params=pltpu.CompilerParams(
            dimension_semantics=("parallel",),
            vmem_limit_bytes=vmem_limit),
    )(x, w_fused)


def self_attention_1d_ref(x, w_q, w_k, w_v):
    """Pure-JAX f32 reference of the same semantics."""
    f = w_q.shape[1]
    coef = 1.0 / (float(f) ** 0.5)
    q = jnp.einsum("btd,df->btf", x, w_q)
    k = jnp.einsum("btd,df->btf", x, w_k)
    v = jnp.einsum("btd,do->bto", x, w_v)
    s = jnp.einsum("btf,buf->btu", q, k) * coef
    a = jax.nn.softmax(s, axis=-1)
    return jnp.einsum("btu,buo->bto", a, v)


if __name__ == "__main__":
    # Param config implied by Build(): Input.Num, Attention.Feature.Num
    # (defaults to Input.Num), Output.Num.
    B, T = 2, 8
    INPUT_NUM = 32
    FEATURE_NUM = INPUT_NUM   # default in Build()
    OUTPUT_NUM = 32

    key = jax.random.PRNGKey(0)
    kx, kq, kk, kv = jax.random.split(key, 4)

    x = jax.random.normal(kx, (B, T, INPUT_NUM), dtype=jnp.float32)
    # Deterministic weight init (stand-in for CreateWeight2D): Xavier-ish scaling.
    w_q = jax.random.normal(kq, (INPUT_NUM, FEATURE_NUM), dtype=jnp.float32) / jnp.sqrt(INPUT_NUM)
    w_k = jax.random.normal(kk, (INPUT_NUM, FEATURE_NUM), dtype=jnp.float32) / jnp.sqrt(INPUT_NUM)
    w_v = jax.random.normal(kv, (INPUT_NUM, OUTPUT_NUM), dtype=jnp.float32) / jnp.sqrt(INPUT_NUM)

    # Built once, outside the per-call hot path.
    w_fused, seg = prepare_fused_weight(w_q, w_k, w_v)

    out = self_attention_1d(x, w_fused, seg=seg, output_num=OUTPUT_NUM)
    out = jax.block_until_ready(out)

    ref = self_attention_1d_ref(x, w_q, w_k, w_v)
    assert out.shape == (B, T, OUTPUT_NUM)
    # bf16 MXU operands + approx EUP reciprocal -> looser tolerance vs f32 ref.
    assert jnp.allclose(out, ref, atol=5e-2, rtol=5e-2), "mismatch vs reference"

    print("KERNEL_OK")
</pallas_src>

<mosaic_0001>
module attributes {stable_mosaic.version = 11 : i64} {
  func.func @kernel(%arg0: i32, %arg1: memref<1x8x32xf32, #tpu.memory_space<vmem>>, %arg2: memref<32x384xbf16, #tpu.memory_space<vmem>>, %arg3: memref<1x8x32xf32, #tpu.memory_space<vmem>>) attributes {dimension_semantics = [#tpu.dimension_semantics<parallel>], iteration_bounds = array<i64: 2>, scalar_prefetch = 0 : i64, scratch_operands = 0 : i64, tpu.core_type = #tpu.core_type<tc>, window_params = [{transform_indices = @transform_0, window_bounds = array<i64: 1, 8, 32>}, {pipeline_mode = #tpu.pipeline_mode<synchronous>, transform_indices = @transform_1, window_bounds = array<i64: 32, 384>}, {transform_indices = @transform_2, window_bounds = array<i64: 1, 8, 32>}]} {
    %c0 = arith.constant 0 : index
    %c0_0 = arith.constant 0 : index
    %c0_1 = arith.constant 0 : index
    %0 = vector.load %arg1[%c0, %c0_0, %c0_1] : memref<1x8x32xf32, #tpu.memory_space<vmem>>, vector<1x8x32xf32>
    %1 = vector.shape_cast %0 : vector<1x8x32xf32> to vector<8x32xf32>
    %2 = arith.truncf %1 : vector<8x32xf32> to vector<8x32xbf16>
    %c0_2 = arith.constant 0 : index
    %c0_3 = arith.constant 0 : index
    %3 = vector.load %arg2[%c0_2, %c0_3] : memref<32x384xbf16, #tpu.memory_space<vmem>>, vector<32x384xbf16>
    %cst = arith.constant dense<0.000000e+00> : vector<8x384xf32>
    %4 = tpu.matmul %2, %3, %cst {dimension_numbers = #tpu.dot_dimension_numbers<[1], [0], [0], [1], [0, 0, 1, 1], [], []>} : vector<8x32xbf16>, vector<32x384xbf16>, vector<8x384xf32> -> vector<8x384xf32>
    %5 = vector.extract_strided_slice %4 {offsets = [0, 0], sizes = [8, 128], strides = [1, 1]} : vector<8x384xf32> to vector<8x128xf32>
    %6 = vector.shape_cast %5 : vector<8x128xf32> to vector<1x8x128xf32>
    %7 = vector.extract_strided_slice %4 {offsets = [0, 128], sizes = [8, 128], strides = [1, 1]} : vector<8x384xf32> to vector<8x128xf32>
    %8 = vector.shape_cast %7 : vector<8x128xf32> to vector<1x8x128xf32>
    %9 = vector.extract_strided_slice %4 {offsets = [0, 256], sizes = [8, 128], strides = [1, 1]} : vector<8x384xf32> to vector<8x128xf32>
    %10 = vector.shape_cast %9 : vector<8x128xf32> to vector<1x8x128xf32>
    %11 = arith.truncf %8 : vector<1x8x128xf32> to vector<1x8x128xbf16>
    %12 = arith.truncf %10 : vector<1x8x128xf32> to vector<1x8x128xbf16>
    "tpu.trace_start"() <{level = 10 : i32, message = "bqf,bkf->bqk"}> : () -> ()
    %cst_4 = arith.constant dense<0.000000e+00> : vector<1x8x8xf32>
    %13 = tpu.matmul %11, %12, %cst_4 {dimension_numbers = #tpu.dot_dimension_numbers<[2], [2], [1], [1], [0, 0, 0, 1, 1, 1], [0], [0]>} : vector<1x8x128xbf16>, vector<1x8x128xbf16>, vector<1x8x8xf32> -> vector<1x8x8xf32>
    "tpu.trace_stop"() : () -> ()
    %cst_5 = arith.constant dense<0xFF800000> : vector<1x8xf32>
    %14 = vector.multi_reduction <maximumf>, %13, %cst_5 [2] : vector<1x8x8xf32> to vector<1x8xf32>
    %15 = vector.shape_cast %14 : vector<1x8xf32> to vector<1x8x1xf32>
    %16 = vector.broadcast %15 : vector<1x8x1xf32> to vector<1x8x8xf32>
    %17 = arith.subf %13, %16 : vector<1x8x8xf32>
    %18 = math.exp %17 : vector<1x8x8xf32>
    %cst_6 = arith.constant dense<0.000000e+00> : vector<1x8xf32>
    %19 = vector.multi_reduction <add>, %18, %cst_6 [2] : vector<1x8x8xf32> to vector<1x8xf32>
    %20 = vector.shape_cast %19 : vector<1x8xf32> to vector<1x8x1xf32>
    %21 = tpu.reciprocal %20 {approx = true} : vector<1x8x1xf32> -> vector<1x8x1xf32>
    %22 = arith.truncf %18 : vector<1x8x8xf32> to vector<1x8x8xbf16>
    %23 = arith.truncf %6 : vector<1x8x128xf32> to vector<1x8x128xbf16>
    "tpu.trace_start"() <{level = 10 : i32, message = "bqk,bko->bqo"}> : () -> ()
    %cst_7 = arith.constant dense<0.000000e+00> : vector<1x8x128xf32>
    %24 = tpu.matmul %22, %23, %cst_7 {dimension_numbers = #tpu.dot_dimension_numbers<[2], [1], [1], [2], [0, 0, 0, 1, 1, 2], [0], [0]>} : vector<1x8x8xbf16>, vector<1x8x128xbf16>, vector<1x8x128xf32> -> vector<1x8x128xf32>
    "tpu.trace_stop"() : () -> ()
    %25 = vector.broadcast %21 : vector<1x8x1xf32> to vector<1x8x128xf32>
    %26 = arith.mulf %24, %25 : vector<1x8x128xf32>
    %27 = vector.extract_strided_slice %26 {offsets = [0, 0, 0], sizes = [1, 8, 32], strides = [1, 1, 1]} : vector<1x8x128xf32> to vector<1x8x32xf32>
    %c0_8 = arith.constant 0 : index
    %c0_9 = arith.constant 0 : index
    %c0_10 = arith.constant 0 : index
    %28 = vector.load %arg3[%c0_8, %c0_9, %c0_10] : memref<1x8x32xf32, #tpu.memory_space<vmem>>, vector<1x8x32xf32>
    tpu.vector_store %arg3[%c0_8, %c0_9, %c0_10], %27 {strides = array<i32>} : memref<1x8x32xf32, #tpu.memory_space<vmem>>, vector<1x8x32xf32>,
    return
  }
  func.func @transform_0(%arg0: i32) -> (i32, i32, i32) {
    %c0_i32 = arith.constant 0 : i32
    %c0_i32_0 = arith.constant 0 : i32
    %c0_i32_1 = arith.constant 0 : i32
    return %arg0, %c0_i32, %c0_i32_0 : i32, i32, i32
  }
  func.func @transform_1(%arg0: i32) -> (i32, i32) {
    %c0_i32 = arith.constant 0 : i32
    %c0_i32_0 = arith.constant 0 : i32
    %c0_i32_1 = arith.constant 0 : i32
    return %c0_i32, %c0_i32_0 : i32, i32
  }
  func.func @transform_2(%arg0: i32) -> (i32, i32, i32) {
    %c0_i32 = arith.constant 0 : i32
    %c0_i32_0 = arith.constant 0 : i32
    %c0_i32_1 = arith.constant 0 : i32
    return %arg0, %c0_i32, %c0_i32_0 : i32, i32, i32
  }
}

</mosaic_0001>

<llo_original>
// kernel: tpu_custom_call.1
$region0: #{tpu_custom_call.1}
  #allocation0 [shape = 'u32[]', space=smem, size = 0x4, offset = 0x4, fixed_abs, tag = 'smem constant byte address 0x4 - core index']
  #allocation1 [shape = 'u32[144,128]{1,0:T(1,128)}', space=vmem, size = 0x12000, scoped, tag = 'internal scratch']
  %s0 = inlined_call_operand.hbm [shape: f32[2,8,32], index: 0, kind: input, shape index: {}]
  %s1 = inlined_call_operand.hbm [shape: bf16[32,384], index: 1, kind: input, shape index: {}]
  %s2 = inlined_call_operand.hbm [shape: f32[2,8,32], index: 2, kind: output, shape index: {}]
  %s3 = sld [smem:[#allocation0]]
  $region49: #{tpu_custom_call.1} parent=0
    _
  %s5 = ssub.s32 1, %s3
  %s6 = scalar_select 0, %s5, %s3
  $region1: #{tpu_custom_call.1} parent=0
    #allocation2 [shape = 'u8[8192]{0}', space=vmem, size = 0x2000, scoped, tag = 'input window, operand 0']
    #allocation3 [shape = 's32[2]{0}', space=sflag, size = 0x8, scoped, tag = 'scoped memory for tpu_custom_call.1']
    #allocation4 [shape = 's32[2]{0}', space=sflag, size = 0x8, scoped, tag = 'scoped memory for tpu_custom_call.1']
    #allocation5 [shape = 'u8[24576]{0}', space=vmem, size = 0x6000, scoped, tag = 'input window, operand 1, single buffered']
    #allocation6 [shape = 's32[1]{0}', space=sflag, size = 0x4, scoped, tag = 'scoped memory for tpu_custom_call.1']
    #allocation7 [shape = 'u8[8192]{0}', space=vmem, size = 0x2000, scoped, tag = 'output window, operand 0']
    %7 = vsyncpa [#allocation3], 0
    %s8 = scalar_lea.sflag [#allocation3], 1
    %9 = vsyncpa %s8, 0
    %10 = vsyncpa [#allocation6], 0
    %11 = vsyncpa [#allocation4], 0
    %s12 = scalar_lea.sflag [#allocation4], 1
    %13 = vsyncpa %s12, 0
    loop: start=0, step=1, limit=4
    $region2: #{tpu_custom_call.1} parent=1 // loop_pre_header
      _
    $region3: #{tpu_custom_call.1} parent=1 // loop_header
      %s15 = sphi 0, %s19
      %p16 = scmp.ge.s32.totalorder %s15, 4
      %s25 = sphi 0, %s27
      %s28 = sphi 0, %s25
      %s29 = sphi 0, %s28
      %s45 = sphi 0, %s29
      %s49 = sphi 0, %s49
      %s51 = sphi 0, %s49
      %s52 = sphi 0, %s51
      %s66 = sphi 0, %s52
      %s72 = sphi 0, %s74
      %s75 = sphi 0, %s72
      %s76 = sphi 0, %s75
      %s92 = sphi 0, %s76
    $region4: #{tpu_custom_call.1} parent=1 // loop_header_branch
      %18 = sbr.rel (%p16) target = $region8
    $region5: #{tpu_custom_call.1} parent=1 // loop_body
      %s20 = ssub.s32 %s15, 1
      %s21 = ssub.s32 %s15, 2
      %s22 = sadd.s32 %s15, 1
      %s23 = ssub.s32 %s15, %s22
      %p24 = scmp.eq.s32.totalorder %s23, 0
      %s26 = sadd.s32 %s25, 1
      %s27 = scalar_select %p24, %s25, %s26
      %p30 = pneg %p24
      %p31 = scmp.eq.s32.totalorder %s15, 1
      %p32 = por %p30, %p31
      %p33 = scmp.ne.s32.totalorder %s25, %s28
      %p34 = scmp.eq.s32.totalorder %s15, 0
      %p35 = por %p33, %p34
      %p36 = scmp.ne.s32.totalorder %s25, %s28
      %p37 = scmp.eq.s32.totalorder %s20, 1
      %p38 = por %p36, %p37
      %p39 = scmp.ne.s32.totalorder %s28, %s29
      %p40 = scmp.eq.s32.totalorder %s20, 0
      %p41 = por %p39, %p40
      %p42 = scmp.ne.s32.totalorder %s28, %s29
      %p43 = scmp.eq.s32.totalorder %s21, 1
      %p44 = por %p42, %p43
      %p46 = scmp.ne.s32.totalorder %s29, %s45
      %p47 = scmp.eq.s32.totalorder %s21, 0
      %p48 = por %p46, %p47
      %s50 = sadd.s32 %s49, 1
      %p53 = scmp.eq.s32.totalorder %s15, 1
      %p54 = scmp.ne.s32.totalorder %s49, %s51
      %p55 = scmp.eq.s32.totalorder %s15, 0
      %p56 = por %p54, %p55
      %p57 = scmp.ne.s32.totalorder %s49, %s51
      %p58 = scmp.eq.s32.totalorder %s20, 1
      %p59 = por %p57, %p58
      %p60 = scmp.ne.s32.totalorder %s51, %s52
      %p61 = scmp.eq.s32.totalorder %s20, 0
      %p62 = por %p60, %p61
      %p63 = scmp.ne.s32.totalorder %s51, %s52
      %p64 = scmp.eq.s32.totalorder %s21, 1
      %p65 = por %p63, %p64
      %p67 = scmp.ne.s32.totalorder %s52, %s66
      %p68 = scmp.eq.s32.totalorder %s21, 0
      %p69 = por %p67, %p68
      %s70 = ssub.s32 %s15, %s22
      %p71 = scmp.eq.s32.totalorder %s70, 0
      %s73 = sadd.s32 %s72, 1
      %s74 = scalar_select %p71, %s72, %s73
      %p77 = pneg %p71
      %p78 = scmp.eq.s32.totalorder %s15, 1
      %p79 = por %p77, %p78
      %p80 = scmp.ne.s32.totalorder %s72, %s75
      %p81 = scmp.eq.s32.totalorder %s15, 0
      %p82 = por %p80, %p81
      %p83 = scmp.ne.s32.totalorder %s72, %s75
      %p84 = scmp.eq.s32.totalorder %s20, 1
      %p85 = por %p83, %p84
      %p86 = scmp.ne.s32.totalorder %s75, %s76
      %p87 = scmp.eq.s32.totalorder %s20, 0
      %p88 = por %p86, %p87
      %p89 = scmp.ne.s32.totalorder %s75, %s76
      %p90 = scmp.eq.s32.totalorder %s21, 1
      %p91 = por %p89, %p90
      %p93 = scmp.ne.s32.totalorder %s76, %s92
      %p94 = scmp.eq.s32.totalorder %s21, 0
      %p95 = por %p93, %p94
      %p96 = scmp.le.s32.totalorder 1, %s15
      %p97 = scmp.lt.s32.totalorder %s15, 3
      %p98 = pnand %p96, %p97
      %p99 = pneg %p98
      // Predicated region
      $region9: #{tpu_custom_call.1} parent=5 // pred_check
        _
      $region10: #{tpu_custom_call.1} parent=5 // pred_check_branch
        %101 = sbr.rel (%p98) target = $region12
      $region11: #{tpu_custom_call.1} parent=5 // pred_region
        %s102 = ssub.s32 %s15, 1
        // Predicated region
        $region13: #{tpu_custom_call.1} parent=11 // pred_check
          %p103 = pneg %p62
        $region14: #{tpu_custom_call.1} parent=11 // pred_check_branch
          %105 = sbr.rel (%p103) target = $region16
        $region15: #{tpu_custom_call.1} parent=11 // pred_region
          %s107 = ssub.s32 768, 768
          %108 = vsyncadd [#allocation6], %s107
          %s109 = sshll.u32 [#allocation5], 4
          %s110 = int_to_ptr.vmem [resolvable:$true] %s109
          %115 = dma.hbm_to_vmem [thread:$0]  %s1, 768, %s110, [#allocation6], 192, 192, 12
        $region16: #{tpu_custom_call.1} parent=11 // pred_fallthru
          _
      $region12: #{tpu_custom_call.1} parent=5 // pred_fallthru
        _
      %p116 = scmp.lt.s32.totalorder %s15, 2
      // Predicated region
      $region17: #{tpu_custom_call.1} parent=5 // pred_check
        %p117 = pneg %p116
      $region18: #{tpu_custom_call.1} parent=5 // pred_check_branch
        %119 = sbr.rel (%p117) target = $region20
      $region19: #{tpu_custom_call.1} parent=5 // pred_region
        // Predicated region
        $region21: #{tpu_custom_call.1} parent=19 // pred_check
          %p120 = pneg %p35
        $region22: #{tpu_custom_call.1} parent=19 // pred_check_branch
          %122 = sbr.rel (%p120) target = $region24
        $region23: #{tpu_custom_call.1} parent=19 // pred_region
          %s123 = sand.u32 %s25, 1
          %s124 = scalar_lea.sflag [#allocation3], %s123
          %s125 = sand.u32 %s25, 1
          %s126 = smul.addr %s125, 8
          %s127 = scalar_lea.vmem [#allocation2], %s126
          %s129 = ssub.s32 128, 128
          %130 = vsyncadd %s124, %s129
          %s131 = smul.addr %s15, 128
          %s132 = scalar_lea.hbm %s0, %s131
          %s134 = sshll.u32 %s127, 4
          %s135 = int_to_ptr.vmem [resolvable:$true] %s134
          %137 = dma.hbm_to_vmem [thread:$0]  %s132, 128, %s135, %s124
        $region24: #{tpu_custom_call.1} parent=19 // pred_fallthru
          _
      $region20: #{tpu_custom_call.1} parent=5 // pred_fallthru
        _
      %p138 = scmp.le.s32.totalorder 1, %s15
      %p139 = scmp.lt.s32.totalorder %s15, 3
      %p140 = pnand %p138, %p139
      %p141 = pneg %p140
      // Predicated region
      $region25: #{tpu_custom_call.1} parent=5 // pred_check
        _
      $region26: #{tpu_custom_call.1} parent=5 // pred_check_branch
        %143 = sbr.rel (%p140) target = $region28
      $region27: #{tpu_custom_call.1} parent=5 // pred_region
        %s144 = ssub.s32 %s15, 1
        %s145 = sand.u32 %s28, 1
        %s146 = scalar_lea.sflag [#allocation3], %s145
        %s147 = sand.u32 %s28, 1
        %s148 = smul.addr %s147, 8
        %s149 = scalar_lea.vmem [#allocation2], %s148
        // Predicated region
        $region29: #{tpu_custom_call.1} parent=27 // pred_check
          %p150 = pneg %p41
        $region30: #{tpu_custom_call.1} parent=27 // pred_check_branch
          %152 = sbr.rel (%p150) target = $region32
        $region31: #{tpu_custom_call.1} parent=27 // pred_region
          %153 = dma.done %s146, 128
        $region32: #{tpu_custom_call.1} parent=27 // pred_fallthru
          _
        // Predicated region
        $region33: #{tpu_custom_call.1} parent=27 // pred_check
          %p154 = pneg %p62
        $region34: #{tpu_custom_call.1} parent=27 // pred_check_branch
          %156 = sbr.rel (%p154) target = $region36
        $region35: #{tpu_custom_call.1} parent=27 // pred_region
          %157 = dma.done [#allocation6], 768
        $region36: #{tpu_custom_call.1} parent=27 // pred_fallthru
          _
        %s158 = sand.u32 %s28, 1
        %s159 = scalar_lea.sflag [#allocation3], %s158
        %s160 = sand.u32 %s28, 1
        %s161 = smul.addr %s160, 8
        %s162 = scalar_lea.vmem [#allocation2], %s161
        %p163 = pneg %p41
        %p164 = pneg %p38
        %p165 = pneg %p62
        %p166 = pneg %p59
        %p167 = pneg %p88
        %p168 = pneg %p85
        %s169 = sand.u32 %s75, 1
        %s170 = scalar_lea.sflag [#allocation4], %s169
        %s171 = sand.u32 %s75, 1
        %s172 = smul.addr %s171, 8
        %s173 = scalar_lea.vmem [#allocation7], %s172
        %v175 = vld [vmem:[%s149] sm:$0xff]
        %v176 = vpack.c.bf16 %v175, %v175
        %v177 = vld [vmem:[#allocation5] sm:$0xff]
        %v178 = vld [vmem:[#allocation5 + $0x8] sm:$0xf]
        %v179 = vld [vmem:[#allocation5 + $0xc] sm:$0xff]
        %v180 = vld [vmem:[#allocation5 + $0x14] sm:$0xf]
        %v181 = vld [vmem:[#allocation5 + $0x18] sm:$0xff]
        %v182 = vld [vmem:[#allocation5 + $0x20] sm:$0xf]
        %v183 = vld [vmem:[#allocation5 + $0x24] sm:$0xff]
        %v184 = vld [vmem:[#allocation5 + $0x2c] sm:$0xf]
        %v193 = vunpack.c.l.b16 %v177
        %v194 = vunpack.c.h.b16 %v177
        %v195 = vunpack.c.l.b16 %v178
        %v196 = vunpack.c.l.b16 %v179
        %v197 = vunpack.c.h.b16 %v179
        %v198 = vunpack.c.l.b16 %v180
        %v199 = vunpack.c.l.b16 %v181
        %v200 = vunpack.c.h.b16 %v181
        %v201 = vunpack.c.l.b16 %v182
        %v202 = vunpack.c.l.b16 %v183
        %v203 = vunpack.c.h.b16 %v183
        %v204 = vunpack.c.l.b16 %v184
        %v205 = vpack.c.b16 %v196, %v193
        %v206 = vpack.c.b16 %v197, %v194
        %v207 = vpack.c.b16 %v198, %v195
        %v208 = vpack.c.b16 %v202, %v199
        %v209 = vpack.c.b16 %v203, %v200
        %v210 = vpack.c.b16 %v204, %v201
        %vm217 = vcmask 261120
        %v219 = vsel %vm217, %v176, 0
        %221 = vmatprep.subr.bf16.mxu0 %v206
        %222 = vmatpush1.bf16.msra.mxu0 %v205
        %223 = vmatprep.subr.bf16.mxu0 %v209
        %224 = vmatpush1.bf16.msra.mxu0 %v208
        %225 = vmatprep.subr.bf16.mxu0 0
        %226 = vmatpush1.bf16.msra.mxu0 0
        %227 = vmatprep.subr.bf16.mxu0 0
        %228 = vmatpush1.bf16.msra.mxu0 0
        %229 = vmatprep.subr.bf16.mxu0 0
        %230 = vmatpush1.bf16.msra.mxu0 0
        %231 = vmatprep.subr.bf16.mxu0 0
        %232 = vmatpush1.bf16.msra.mxu0 0
        %233 = vmatprep.subr.bf16.mxu0 0
        %234 = vmatpush1.bf16.msra.mxu0 0
        %235 = vmatprep.subr.bf16.mxu0 0
        %236 = vmatpush1.bf16.msra.mxu0 0
        %237 = vmatprep.subr.bf16.mxu0 0
        %238 = vmatpush1.bf16.msra.mxu0 0
        %239 = vmatprep.subr.bf16.mxu0 0
        %240 = vmatpush1.bf16.msra.mxu0 0
        %241 = vmatprep.subr.bf16.mxu0 0
        %242 = vmatpush1.bf16.msra.mxu0 0
        %243 = vmatprep.subr.bf16.mxu0 0
        %244 = vmatpush1.bf16.msra.mxu0 0
        %245 = vmatprep.subr.bf16.mxu0 0
        %246 = vmatpush1.bf16.msra.mxu0 0
        %247 = vmatprep.subr.bf16.mxu0 0
        %248 = vmatpush1.bf16.msra.mxu0 0
        %249 = vmatprep.subr.bf16.mxu0 0
        %250 = vmatpush1.bf16.msra.mxu0 0
        %251 = vmatprep.subr.bf16.mxu0 0
        %252 = vmatpush1.bf16.msra.mxu0 0
        %253 = vmatprep.mubr.bf16.mxu0 0
        %254 = vmatmul.mubr.bf16.gmra.mrb[0].mxu0 %v219
        %v255 = vpop.f32.mrb[0].mxu0
        %v256 = vadd.f32 0.0, %v255
        %v257 = vpop.f32.mrb[0].mxu0
        %v258 = vadd.f32 0.0, %v257
        %v259 = vpop.f32.mrb[0].mxu0
        %v260 = vpop.f32.mrb[0].mxu0
        %261 = vdwg.mxu0
        %262 = vmatprep.subr.bf16.mxu0 0
        %263 = vmatpush1.bf16.msra.mxu0 %v207
        %264 = vmatprep.subr.bf16.mxu0 0
        %265 = vmatpush1.bf16.msra.mxu0 %v210
        %266 = vmatprep.subr.bf16.mxu0 0
        %267 = vmatpush1.bf16.msra.mxu0 0
        %268 = vmatprep.subr.bf16.mxu0 0
        %269 = vmatpush1.bf16.msra.mxu0 0
        %270 = vmatprep.subr.bf16.mxu0 0
        %271 = vmatpush1.bf16.msra.mxu0 0
        %272 = vmatprep.subr.bf16.mxu0 0
        %273 = vmatpush1.bf16.msra.mxu0 0
        %274 = vmatprep.subr.bf16.mxu0 0
        %275 = vmatpush1.bf16.msra.mxu0 0
        %276 = vmatprep.subr.bf16.mxu0 0
        %277 = vmatpush1.bf16.msra.mxu0 0
        %278 = vmatprep.subr.bf16.mxu0 0
        %279 = vmatpush1.bf16.msra.mxu0 0
        %280 = vmatprep.subr.bf16.mxu0 0
        %281 = vmatpush1.bf16.msra.mxu0 0
        %282 = vmatprep.subr.bf16.mxu0 0
        %283 = vmatpush1.bf16.msra.mxu0 0
        %284 = vmatprep.subr.bf16.mxu0 0
        %285 = vmatpush1.bf16.msra.mxu0 0
        %286 = vmatprep.subr.bf16.mxu0 0
        %287 = vmatpush1.bf16.msra.mxu0 0
        %288 = vmatprep.subr.bf16.mxu0 0
        %289 = vmatpush1.bf16.msra.mxu0 0
        %290 = vmatprep.subr.bf16.mxu0 0
        %291 = vmatpush1.bf16.msra.mxu0 0
        %292 = vmatprep.subr.bf16.mxu0 0
        %293 = vmatpush1.bf16.msra.mxu0 0
        %294 = vmatprep.mubr.bf16.mxu0 0
        %295 = vmatmul.mubr.bf16.gmra.mrb[0].mxu0 %v219
        %v296 = vpop.f32.mrb[0].mxu0
        %v297 = vadd.f32 0.0, %v296
        %v298 = vpop.f32.mrb[0].mxu0
        %v299 = vpop.f32.mrb[0].mxu0
        %v300 = vpop.f32.mrb[0].mxu0
        %301 = vdwg.mxu0
        %v302 = vpack.c.bf16 %v258, %v258
        %v303 = vpack.c.bf16 %v297, %v297
        %304 = vmatprep.subr.bf16.mxu0 0
        %305 = vmatpush1.bf16.xpose.msra.mxu0 %v303
        %306 = vmatprep.subr.bf16.mxu0 0
        %307 = vmatpush1.bf16.xpose.msra.mxu0 0
        %308 = vmatprep.subr.bf16.mxu0 0
        %309 = vmatpush1.bf16.xpose.msra.mxu0 0
        %310 = vmatprep.subr.bf16.mxu0 0
        %311 = vmatpush1.bf16.xpose.msra.mxu0 0
        %312 = vmatprep.subr.bf16.mxu0 0
        %313 = vmatpush1.bf16.xpose.msra.mxu0 0
        %314 = vmatprep.subr.bf16.mxu0 0
        %315 = vmatpush1.bf16.xpose.msra.mxu0 0
        %316 = vmatprep.subr.bf16.mxu0 0
        %317 = vmatpush1.bf16.xpose.msra.mxu0 0
        %318 = vmatprep.subr.bf16.mxu0 0
        %319 = vmatpush1.bf16.xpose.msra.mxu0 0
        %320 = vmatprep.subr.bf16.mxu0 0
        %321 = vmatpush1.bf16.xpose.msra.mxu0 0
        %322 = vmatprep.subr.bf16.mxu0 0
        %323 = vmatpush1.bf16.xpose.msra.mxu0 0
        %324 = vmatprep.subr.bf16.mxu0 0
        %325 = vmatpush1.bf16.xpose.msra.mxu0 0
        %326 = vmatprep.subr.bf16.mxu0 0
        %327 = vmatpush1.bf16.xpose.msra.mxu0 0
        %328 = vmatprep.subr.bf16.mxu0 0
        %329 = vmatpush1.bf16.xpose.msra.mxu0 0
        %330 = vmatprep.subr.bf16.mxu0 0
        %331 = vmatpush1.bf16.xpose.msra.mxu0 0
        %332 = vmatprep.subr.bf16.mxu0 0
        %333 = vmatpush1.bf16.xpose.msra.mxu0 0
        %334 = vmatprep.subr.bf16.mxu0 0
        %335 = vmatpush1.bf16.xpose.msra.mxu0 0
        %336 = vmatprep.mubr.bf16.mxu0 0
        %337 = vmatmul.mubr.bf16.gmra.mrb[0].mxu0 %v302
        %v338 = vpop.f32.mrb[0].mxu0
        %v339 = vadd.f32 0.0, %v338
        %v340 = vpop.f32.mrb[0].mxu0
        %v341 = vpop.f32.mrb[0].mxu0
        %v342 = vpop.f32.mrb[0].mxu0
        %343 = vdwg.mxu0
        %vm344 = vcmask 64512
        %v345 = vsel %vm344, %v339, -inf
        %346 = vmax.xlane.f32.xlu0 %v345
        %v347 = vpop.xlane.xlu0 %346
        %v348 = vsub.f32 %v339, %v347
        %v349 = vmul.f32 %v348, 1.442695
        %v350 = vpow.pop %v349
        %v351 = vsel %vm344, %v350, 0.0
        %352 = vadd.xlane.f32.xlu0 %v351
        %v353 = vpop.xlane.xlu0 %352
        %v354 = vrcp.pop %v353
        %v355 = vpack.c.bf16 %v350, %v350
        %v356 = vpack.c.bf16 %v256, %v256
        %v358 = vsel %vm344, %v355, 0
        %vm360 = vcmask 1043456
        %v362 = vsel %vm360, %v356, 0
        %364 = vmatprep.subr.bf16.mxu0 0
        %365 = vmatpush1.bf16.msra.mxu0 %v362
        %366 = vmatprep.subr.bf16.mxu0 0
        %367 = vmatpush1.bf16.msra.mxu0 0
        %368 = vmatprep.subr.bf16.mxu0 0
        %369 = vmatpush1.bf16.msra.mxu0 0
        %370 = vmatprep.subr.bf16.mxu0 0
        %371 = vmatpush1.bf16.msra.mxu0 0
        %372 = vmatprep.subr.bf16.mxu0 0
        %373 = vmatpush1.bf16.msra.mxu0 0
        %374 = vmatprep.subr.bf16.mxu0 0
        %375 = vmatpush1.bf16.msra.mxu0 0
        %376 = vmatprep.subr.bf16.mxu0 0
        %377 = vmatpush1.bf16.msra.mxu0 0
        %378 = vmatprep.subr.bf16.mxu0 0
        %379 = vmatpush1.bf16.msra.mxu0 0
        %380 = vmatprep.subr.bf16.mxu0 0
        %381 = vmatpush1.bf16.msra.mxu0 0
        %382 = vmatprep.subr.bf16.mxu0 0
        %383 = vmatpush1.bf16.msra.mxu0 0
        %384 = vmatprep.subr.bf16.mxu0 0
        %385 = vmatpush1.bf16.msra.mxu0 0
        %386 = vmatprep.subr.bf16.mxu0 0
        %387 = vmatpush1.bf16.msra.mxu0 0
        %388 = vmatprep.subr.bf16.mxu0 0
        %389 = vmatpush1.bf16.msra.mxu0 0
        %390 = vmatprep.subr.bf16.mxu0 0
        %391 = vmatpush1.bf16.msra.mxu0 0
        %392 = vmatprep.subr.bf16.mxu0 0
        %393 = vmatpush1.bf16.msra.mxu0 0
        %394 = vmatprep.subr.bf16.mxu0 0
        %395 = vmatpush1.bf16.msra.mxu0 0
        %396 = vmatprep.mubr.bf16.mxu0 0
        %397 = vmatmul.mubr.bf16.gmra.mrb[0].mxu0 %v358
        %v398 = vpop.f32.mrb[0].mxu0
        %v399 = vadd.f32 0.0, %v398
        %v400 = vpop.f32.mrb[0].mxu0
        %v401 = vpop.f32.mrb[0].mxu0
        %v402 = vpop.f32.mrb[0].mxu0
        %403 = vdwg.mxu0
        %v404 = vmul.f32 %v399, %v354
        %405 = vst.msk [vmem:[%s173] sm:$0xff] %vm217, %v404
        %s406 = sand.u32 %s75, 1
        %s407 = scalar_lea.sflag [#allocation4], %s406
        %s408 = sand.u32 %s75, 1
        %s409 = smul.addr %s408, 8
        %s410 = scalar_lea.vmem [#allocation7], %s409
        // Predicated region
        $region37: #{tpu_custom_call.1} parent=27 // pred_check
          %p411 = pneg %p85
        $region38: #{tpu_custom_call.1} parent=27 // pred_check_branch
          %413 = sbr.rel (%p411) target = $region40
        $region39: #{tpu_custom_call.1} parent=27 // pred_region
          %s415 = ssub.s32 128, 128
          %416 = vsyncadd %s407, %s415
          %s417 = smul.addr %s20, 128
          %s418 = scalar_lea.hbm %s2, %s417
          %s420 = sshll.u32 %s410, 4
          %s421 = int_to_ptr.vmem [resolvable:$true] %s420
          %423 = dma.vmem_to_hbm [thread:$0]  %s421, 128, %s418, %s407
        $region40: #{tpu_custom_call.1} parent=27 // pred_fallthru
          _
      $region28: #{tpu_custom_call.1} parent=5 // pred_fallthru
        _
      %p424 = scmp.le.s32.totalorder 2, %s15
      // Predicated region
      $region41: #{tpu_custom_call.1} parent=5 // pred_check
        %p425 = pneg %p424
      $region42: #{tpu_custom_call.1} parent=5 // pred_check_branch
        %427 = sbr.rel (%p425) target = $region44
      $region43: #{tpu_custom_call.1} parent=5 // pred_region
        %s428 = ssub.s32 %s15, 2
        // Predicated region
        $region45: #{tpu_custom_call.1} parent=43 // pred_check
          %p429 = pneg %p91
        $region46: #{tpu_custom_call.1} parent=43 // pred_check_branch
          %431 = sbr.rel (%p429) target = $region48
        $region47: #{tpu_custom_call.1} parent=43 // pred_region
          %s432 = sand.u32 %s76, 1
          %s433 = scalar_lea.sflag [#allocation4], %s432
          %s434 = sand.u32 %s76, 1
          %s435 = smul.addr %s434, 8
          %s436 = scalar_lea.vmem [#allocation7], %s435
          %437 = dma.done %s433, 128
        $region48: #{tpu_custom_call.1} parent=43 // pred_fallthru
          _
      $region44: #{tpu_custom_call.1} parent=5 // pred_fallthru
        _
    $region6: #{tpu_custom_call.1} parent=1 // loop_footer
      %s19 = sadd.s32 1, %s15
    $region7: #{tpu_custom_call.1} parent=1 // loop_footer_branch
      %14 = sbr.rel target = $region3
    $region8: #{tpu_custom_call.1} parent=1 // loop_exit
      _
    %438 = vsyncpa [#allocation3], 1
    %s439 = scalar_lea.sflag [#allocation3], 1
    %440 = vsyncpa %s439, 1
    %441 = vsyncpa [#allocation6], 1
    %442 = vsyncpa [#allocation4], 1
    %s443 = scalar_lea.sflag [#allocation4], 1
    %444 = vsyncpa %s443, 1

</llo_original>
